<compile_context>
chip_gen: v6e
topology: v6e:2x2x1
jax: 0.10.0
libtpu: 0.0.40
codegen_flags: <defaults>
</compile_context>

<pallas_src>
import jax
import jax.numpy as jnp
from jax.experimental import pallas as pl
from jax.experimental.pallas import tpu as pltpu


_LANES = 128  # vreg lane width — packing target


def _round_up(x, m):
    return ((x + m - 1) // m) * m


def _packed_classifier_kernel(x_ref, w_ref, b_ref, o_ref):
    # x_ref: (bt, 128) packed input rows (32 logical rows of 4 features each)
    # w_ref: (128, 96)  block-diagonal kron(I_32, W.T)
    # b_ref: (1, 96)    bias tiled 32x
    # o_ref: (bt, 96)   packed sigmoid outputs (32 logical rows of 3 classes)
    z = jnp.dot(x_ref[...], w_ref[...], preferred_element_type=jnp.float32)
    z = z + b_ref[...]
    # sigmoid(z) == 0.5 * (tanh(z/2) + 1): one EUP op, no exact VPU divide;
    # matches the exp-form sigmoid well inside the 1e-5 tolerance.
    o_ref[...] = (0.5 * (jnp.tanh(0.5 * z) + 1.0)).astype(o_ref.dtype)


def prepare_params(weight, bias):
    """One-time conversion from torch.nn.Linear layout to the packed kernel layout.

    weight: (out_f, in_f); bias: (out_f,).
    Returns packed params:
      w_packed = kron(I_group, W.T): (group*in_f, group*out_f) = (128, 96)
      b_packed = tile(bias, group):  (1, group*out_f)          = (1, 96)
    Call at parameter-load time, NOT per forward call.
    """
    w = jnp.asarray(weight, jnp.float32)
    b = jnp.asarray(bias, jnp.float32)
    out_f, in_f = w.shape
    assert _LANES % in_f == 0, "lane packing needs in_features to divide 128"
    group = _LANES // in_f                      # 32 logical rows per packed row
    w_packed = jnp.kron(jnp.eye(group, dtype=jnp.float32), w.T)   # (128, 96)
    b_packed = jnp.tile(b, group).reshape(1, group * out_f)       # (1, 96)
    return {
        "w_packed": w_packed,
        "b_packed": b_packed,
        "in_f": int(in_f),
        "out_f": int(out_f),
        "group": int(group),
    }


def classifier_forward(x, params, *, batch_tile=131072, max_single_tile_rows=65536):
    """x: (B, in_f) f32 -> sigmoid(x @ W.T + b): (B, out_f) f32."""
    w_packed = params["w_packed"]
    b_packed = params["b_packed"]
    in_f = params["in_f"]
    out_f = params["out_f"]
    group = params["group"]

    B = x.shape[0]
    assert x.shape[1] == in_f

    # Pad the batch to a multiple of the packing group.  Zero padding keeps the
    # dead rows at sigmoid(bias) (finite, benign); they are sliced off below.
    B_pad = _round_up(max(B, group), group)
    if B_pad != B:
        x = jnp.pad(x, ((0, B_pad - B), (0, 0)))
    Bp = B_pad // group
    lanes = group * in_f            # 128
    out_w = group * out_f           # 96
    x_packed = jnp.reshape(x, (Bp, lanes))     # free row-major view of (B_pad, in_f)

    cost = pl.CostEstimate(
        flops=2 * Bp * lanes * out_w,
        transcendentals=Bp * out_w,
        bytes_accessed=4 * (Bp * lanes + lanes * out_w + out_w + Bp * out_w),
    )

    if B_pad <= max_single_tile_rows:
        # Single-tile problem: no grid => no software-pipeline machinery.
        # Whole (packed) arrays are staged into VMEM once; kernel runs once.
        out_packed = pl.pallas_call(
            _packed_classifier_kernel,
            out_shape=jax.ShapeDtypeStruct((Bp, out_w), jnp.float32),
            in_specs=[
                pl.BlockSpec(memory_space=pltpu.MemorySpace.VMEM),
                pl.BlockSpec(memory_space=pltpu.MemorySpace.VMEM),
                pl.BlockSpec(memory_space=pltpu.MemorySpace.VMEM),
            ],
            out_specs=pl.BlockSpec(memory_space=pltpu.MemorySpace.VMEM),
            cost_estimate=cost,
        )(x_packed, w_packed, b_packed)
    else:
        # Large batch: tile only the packed-batch dim.  Big tiles amortize the
        # ~0.35 us/step grid overhead; weight/bias block indices are constant
        # so they are DMA'd once.  Tile size is clamped so the grid has >= 2
        # steps, letting v7x's two TensorCores split the "parallel" axis.
        tile_p = max(8, batch_tile // group)
        tile_p = min(tile_p, _round_up(pl.cdiv(Bp, 2), 8))   # guarantee >= 2 grid steps
        tile_p = max(8, (tile_p // 8) * 8)                   # (8,128) sublane rule
        grid = pl.cdiv(Bp, tile_p)
        # If Bp % tile_p != 0 the last block computes on garbage-padded rows
        # before the masked writeback discards them; tanh keeps those values
        # finite, so this is benign.
        out_packed = pl.pallas_call(
            _packed_classifier_kernel,
            out_shape=jax.ShapeDtypeStruct((Bp, out_w), jnp.float32),
            grid=(grid,),
            in_specs=[
                pl.BlockSpec((tile_p, lanes), lambda i: (i, 0)),
                pl.BlockSpec((lanes, out_w), lambda i: (0, 0)),
                pl.BlockSpec((1, out_w), lambda i: (0, 0)),
            ],
            out_specs=pl.BlockSpec((tile_p, out_w), lambda i: (i, 0)),
            compiler_params=pltpu.CompilerParams(
                dimension_semantics=("parallel",),
            ),
            cost_estimate=cost,
        )(x_packed, w_packed, b_packed)

    out = jnp.reshape(out_packed, (B_pad, out_f))   # free view back to row layout
    if B_pad != B:
        out = out[:B]
    return out


def classifier_reference(x, weight, bias):
    return jax.nn.sigmoid(x @ weight.T + bias)


if __name__ == "__main__":
    key = jax.random.PRNGKey(0)
    k_w, k_b, k_x1, k_x2, k_x3 = jax.random.split(key, 5)

    in_features, out_features = 4, 3

    # Deterministic parameter init mimicking torch.nn.Linear default
    # (uniform in [-1/sqrt(fan_in), 1/sqrt(fan_in)]).
    bound = 1.0 / jnp.sqrt(jnp.float32(in_features))
    weight = jax.random.uniform(
        k_w, (out_features, in_features), jnp.float32, -bound, bound
    )
    bias = jax.random.uniform(k_b, (out_features,), jnp.float32, -bound, bound)

    # One-time param packing (hoisted out of the per-call path).
    params = prepare_params(weight, bias)

    # --- tiny batch (B=8): padded to one 32-row packing group, no-grid path ---
    x1 = jax.random.uniform(k_x1, (8, in_features), jnp.float32, 0.0, 8.0)
    out1 = jax.block_until_ready(classifier_forward(x1, params))
    ref1 = classifier_reference(x1, weight, bias)
    assert out1.shape == (8, out_features)
    assert jnp.allclose(out1, ref1, atol=1e-5, rtol=1e-5)

    # --- non-multiple-of-32 batch (B=300): pad + slice, still no-grid ---
    x2 = jax.random.uniform(k_x2, (300, in_features), jnp.float32, 0.0, 8.0)
    out2 = jax.block_until_ready(classifier_forward(x2, params))
    ref2 = classifier_reference(x2, weight, bias)
    assert out2.shape == (300, out_features)
    assert jnp.allclose(out2, ref2, atol=1e-5, rtol=1e-5)

    # --- batch-tiled (gridded) path, exercised with small overrides so the
    #     test stays small: Bp=64 packed rows, tile_p=32, grid=(2,) ---
    x3 = jax.random.uniform(k_x3, (2048, in_features), jnp.float32, 0.0, 8.0)
    out3 = jax.block_until_ready(
        classifier_forward(x3, params, batch_tile=1024, max_single_tile_rows=512)
    )
    ref3 = classifier_reference(x3, weight, bias)
    assert out3.shape == (2048, out_features)
    assert jnp.allclose(out3, ref3, atol=1e-5, rtol=1e-5)

    print("KERNEL_OK")
</pallas_src>

<mosaic_0001>
module attributes {stable_mosaic.version = 11 : i64} {
  func.func @_packed_classifier_kernel(%arg0: memref<1x128xf32, #tpu.memory_space<vmem>>, %arg1: memref<128x96xf32, #tpu.memory_space<vmem>>, %arg2: memref<1x96xf32, #tpu.memory_space<vmem>>, %arg3: memref<1x96xf32, #tpu.memory_space<vmem>>) attributes {dimension_semantics = [], scalar_prefetch = 0 : i64, scratch_operands = 0 : i64, tpu.core_type = #tpu.core_type<tc>} {
    %c0 = arith.constant 0 : index
    %c0_0 = arith.constant 0 : index
    %0 = vector.load %arg0[%c0, %c0_0] : memref<1x128xf32, #tpu.memory_space<vmem>>, vector<1x128xf32>
    %c0_1 = arith.constant 0 : index
    %c0_2 = arith.constant 0 : index
    %1 = vector.load %arg1[%c0_1, %c0_2] : memref<128x96xf32, #tpu.memory_space<vmem>>, vector<128x96xf32>
    %cst = arith.constant dense<0.000000e+00> : vector<1x96xf32>
    %2 = tpu.matmul %0, %1, %cst {dimension_numbers = #tpu.dot_dimension_numbers<[1], [0], [0], [1], [0, 0, 1, 1], [], []>} : vector<1x128xf32>, vector<128x96xf32>, vector<1x96xf32> -> vector<1x96xf32>
    %c0_3 = arith.constant 0 : index
    %c0_4 = arith.constant 0 : index
    %3 = vector.load %arg2[%c0_3, %c0_4] : memref<1x96xf32, #tpu.memory_space<vmem>>, vector<1x96xf32>
    %4 = arith.addf %2, %3 : vector<1x96xf32>
    %cst_5 = arith.constant 5.000000e-01 : f32
    %5 = vector.broadcast %cst_5 : f32 to vector<1x96xf32>
    %6 = arith.mulf %5, %4 : vector<1x96xf32>
    %7 = math.tanh %6 : vector<1x96xf32>
    %cst_6 = arith.constant 1.000000e+00 : f32
    %8 = vector.broadcast %cst_6 : f32 to vector<1x96xf32>
    %9 = arith.addf %7, %8 : vector<1x96xf32>
    %cst_7 = arith.constant 5.000000e-01 : f32
    %10 = vector.broadcast %cst_7 : f32 to vector<1x96xf32>
    %11 = arith.mulf %10, %9 : vector<1x96xf32>
    %c0_8 = arith.constant 0 : index
    %c0_9 = arith.constant 0 : index
    %12 = vector.load %arg3[%c0_8, %c0_9] : memref<1x96xf32, #tpu.memory_space<vmem>>, vector<1x96xf32>
    tpu.vector_store %arg3[%c0_8, %c0_9], %11 {strides = array<i32>} : memref<1x96xf32, #tpu.memory_space<vmem>>, vector<1x96xf32>,
    return
  }
}

</mosaic_0001>

<llo_original>
// kernel: tpu_custom_call.1
$region0: #{tpu_custom_call.1}
  #allocation0 [shape = 'u32[]', space=smem, size = 0x4, offset = 0x4, fixed_abs, tag = 'smem constant byte address 0x4 - core index']
  #allocation1 [shape = 'u32[144,128]{1,0:T(1,128)}', space=vmem, size = 0x12000, scoped, tag = 'internal scratch']
  %s0 = inlined_call_operand.vmem [shape: f32[1,128], index: 0, kind: input, shape index: {}]
  %s1 = inlined_call_operand.vmem [shape: f32[128,96], index: 1, kind: input, shape index: {}]
  %s2 = inlined_call_operand.vmem [shape: f32[1,96], index: 2, kind: input, shape index: {}]
  %s3 = inlined_call_operand.hbm [shape: f32[1,96], index: 3, kind: output, shape index: {}]
  %s4 = sld [smem:[#allocation0]]
  $region22: #{tpu_custom_call.1} parent=0
    _
  %s6 = ssub.s32 1, %s4
  %s7 = scalar_select 0, %s6, %s4
  $region1: #{tpu_custom_call.1} parent=0
    #allocation2 [shape = 'u8[512]{0}', space=vmem, size = 0x400, scoped, tag = 'output window, operand 0, single buffered']
    #allocation3 [shape = 's32[1]{0}', space=sflag, size = 0x4, scoped, tag = 'scoped memory for tpu_custom_call.1']
    %8 = vsyncpa [#allocation3], 0
    // Predicated region
    $region2: #{tpu_custom_call.1} parent=1 // pred_check
      _
    $region3: #{tpu_custom_call.1} parent=1 // pred_check_branch
      %10 = sbr.rel (0) target = $region5
    $region4: #{tpu_custom_call.1} parent=1 // pred_region
      _
    $region5: #{tpu_custom_call.1} parent=1 // pred_fallthru
      _
    // Predicated region
    $region6: #{tpu_custom_call.1} parent=1 // pred_check
      _
    $region7: #{tpu_custom_call.1} parent=1 // pred_check_branch
      %12 = sbr.rel (0) target = $region9
    $region8: #{tpu_custom_call.1} parent=1 // pred_region
      _
    $region9: #{tpu_custom_call.1} parent=1 // pred_fallthru
      _
    // Predicated region
    $region10: #{tpu_custom_call.1} parent=1 // pred_check
      _
    $region11: #{tpu_custom_call.1} parent=1 // pred_check_branch
      %14 = sbr.rel (0) target = $region13
    $region12: #{tpu_custom_call.1} parent=1 // pred_region
      _
    $region13: #{tpu_custom_call.1} parent=1 // pred_fallthru
      _
    %v15 = vld [vmem:[%s0] sm:$0x1]
    %v16 = vld [vmem:[%s1] sm:$0xff]
    %v17 = vld [vmem:[%s1 + $0x8] sm:$0xff]
    %v18 = vld [vmem:[%s1 + $0x10] sm:$0xff]
    %v19 = vld [vmem:[%s1 + $0x18] sm:$0xff]
    %v20 = vld [vmem:[%s1 + $0x20] sm:$0xff]
    %v21 = vld [vmem:[%s1 + $0x28] sm:$0xff]
    %v22 = vld [vmem:[%s1 + $0x30] sm:$0xff]
    %v23 = vld [vmem:[%s1 + $0x38] sm:$0xff]
    %v24 = vld [vmem:[%s1 + $0x40] sm:$0xff]
    %v25 = vld [vmem:[%s1 + $0x48] sm:$0xff]
    %v26 = vld [vmem:[%s1 + $0x50] sm:$0xff]
    %v27 = vld [vmem:[%s1 + $0x58] sm:$0xff]
    %v28 = vld [vmem:[%s1 + $0x60] sm:$0xff]
    %v29 = vld [vmem:[%s1 + $0x68] sm:$0xff]
    %v30 = vld [vmem:[%s1 + $0x70] sm:$0xff]
    %v31 = vld [vmem:[%s1 + $0x78] sm:$0xff]
    %v32 = vld [vmem:[%s2] sm:$0x1]
    %33 = vmatprep.subr.mxu0 0.0
    %34 = vmatpush1.msra.mxu0 %v31
    %35 = vmatprep.subr.mxu0 0.0
    %36 = vmatpush1.msra.mxu0 %v30
    %37 = vmatprep.subr.mxu0 0.0
    %38 = vmatpush1.msra.mxu0 %v29
    %39 = vmatprep.subr.mxu0 0.0
    %40 = vmatpush1.msra.mxu0 %v28
    %41 = vmatprep.subr.mxu0 0.0
    %42 = vmatpush1.msra.mxu0 %v27
    %43 = vmatprep.subr.mxu0 0.0
    %44 = vmatpush1.msra.mxu0 %v26
    %45 = vmatprep.subr.mxu0 0.0
    %46 = vmatpush1.msra.mxu0 %v25
    %47 = vmatprep.subr.mxu0 0.0
    %48 = vmatpush1.msra.mxu0 %v24
    %49 = vmatprep.subr.mxu0 0.0
    %50 = vmatpush1.msra.mxu0 %v23
    %51 = vmatprep.subr.mxu0 0.0
    %52 = vmatpush1.msra.mxu0 %v22
    %53 = vmatprep.subr.mxu0 0.0
    %54 = vmatpush1.msra.mxu0 %v21
    %55 = vmatprep.subr.mxu0 0.0
    %56 = vmatpush1.msra.mxu0 %v20
    %57 = vmatprep.subr.mxu0 0.0
    %58 = vmatpush1.msra.mxu0 %v19
    %59 = vmatprep.subr.mxu0 0.0
    %60 = vmatpush1.msra.mxu0 %v18
    %61 = vmatprep.subr.mxu0 0.0
    %62 = vmatpush1.msra.mxu0 %v17
    %63 = vmatprep.subr.mxu0 0.0
    %64 = vmatpush1.msra.mxu0 %v16
    %65 = vmatprep.subr.mxu0 0.0
    %66 = vmatpush2.msra.mxu0 0.0
    %67 = vmatprep.subr.mxu0 0.0
    %68 = vmatpush2.msra.mxu0 0.0
    %69 = vmatprep.subr.mxu0 0.0
    %70 = vmatpush2.msra.mxu0 0.0
    %71 = vmatprep.subr.mxu0 0.0
    %72 = vmatpush2.msra.mxu0 0.0
    %73 = vmatprep.subr.mxu0 0.0
    %74 = vmatpush2.msra.mxu0 0.0
    %75 = vmatprep.subr.mxu0 0.0
    %76 = vmatpush2.msra.mxu0 0.0
    %77 = vmatprep.subr.mxu0 0.0
    %78 = vmatpush2.msra.mxu0 0.0
    %79 = vmatprep.subr.mxu0 0.0
    %80 = vmatpush2.msra.mxu0 0.0
    %81 = vmatprep.subr.mxu0 0.0
    %82 = vmatpush2.msra.mxu0 0.0
    %83 = vmatprep.subr.mxu0 0.0
    %84 = vmatpush2.msra.mxu0 0.0
    %85 = vmatprep.subr.mxu0 0.0
    %86 = vmatpush2.msra.mxu0 0.0
    %87 = vmatprep.subr.mxu0 0.0
    %88 = vmatpush2.msra.mxu0 0.0
    %89 = vmatprep.subr.mxu0 0.0
    %90 = vmatpush2.msra.mxu0 0.0
    %91 = vmatprep.subr.mxu0 0.0
    %92 = vmatpush2.msra.mxu0 0.0
    %93 = vmatprep.subr.mxu0 0.0
    %94 = vmatpush2.msra.mxu0 0.0
    %95 = vmatprep.subr.mxu0 0.0
    %96 = vmatpush2.msra.mxu0 0.0
    %97 = vmatprep.mubr.f32.mxu0 0.0
    %98 = vmatmul.mubr.f32.gmra.mxu0 %v15
    %v99 = vpop.f32.mrf.mxu0
    %v100 = vadd.f32 %v32, %v99
    %v101 = vpop.f32.mrf.mxu0
    %102 = vdwg.mxu0
    %v103 = vmul.f32 %v100, 0.5
    %v104 = vtanh.pop %v103
    %v105 = vadd.f32 %v104, 1.0
    %v106 = vmul.f32 %v105, 0.5
    %vm107 = vcmask 778240
    %108 = vst.msk [vmem:[#allocation2] sm:$0x1] %vm107, %v106
    // Predicated region
    $region14: #{tpu_custom_call.1} parent=1 // pred_check
      _
    $region15: #{tpu_custom_call.1} parent=1 // pred_check_branch
      %110 = sbr.rel (0) target = $region17
    $region16: #{tpu_custom_call.1} parent=1 // pred_region
      %s112 = ssub.s32 16, 16
      %113 = vsyncadd [#allocation3], %s112
      %s115 = sshll.u32 [#allocation2], 4
      %s116 = int_to_ptr.vmem [resolvable:$true] %s115
      %118 = dma.vmem_to_hbm [thread:$0]  %s116, 16, %s3, [#allocation3]
    $region17: #{tpu_custom_call.1} parent=1 // pred_fallthru
      _
    // Predicated region
    $region18: #{tpu_custom_call.1} parent=1 // pred_check
      _
    $region19: #{tpu_custom_call.1} parent=1 // pred_check_branch
      %120 = sbr.rel (0) target = $region21
    $region20: #{tpu_custom_call.1} parent=1 // pred_region
      %121 = dma.done [#allocation3], 16
    $region21: #{tpu_custom_call.1} parent=1 // pred_fallthru
      _
    %122 = vsyncpa [#allocation3], 1

</llo_original>
